<compile_context>
chip_gen: v7x
topology: tpu7x:2x2x1
jax: 0.10.0
libtpu: 0.0.40
codegen_flags: <defaults>
</compile_context>

<pallas_src>
import functools

import jax
import jax.numpy as jnp
from jax.experimental import pallas as pl
from jax.experimental.pallas import tpu as pltpu


def _distill_kl_kernel(ys_ref, yt_ref, out_ref, acc_ref, *,
                       inv_t, scale, batch, block_b, steps):
    s = pl.program_id(0)   # split (TensorCore) axis
    i = pl.program_id(1)   # batch-tile reduction axis ("arbitrary")

    @pl.when(i == 0)
    def _():
        acc_ref[...] = jnp.zeros_like(acc_ref)

    ys = ys_ref[...].astype(jnp.float32) * inv_t
    yt = yt_ref[...].astype(jnp.float32) * inv_t

    # numerically stable shifted logits
    ys_sh = ys - jnp.max(ys, axis=-1, keepdims=True)
    yt_sh = yt - jnp.max(yt, axis=-1, keepdims=True)

    z_s = jnp.sum(jnp.exp(ys_sh), axis=-1, keepdims=True)
    e_t = jnp.exp(yt_sh)
    z_t = jnp.sum(e_t, axis=-1, keepdims=True)

    # Fused per-row KL (uses sum_c p_t == 1):
    #   sum_c p_t*(log p_t - log p_s)
    #     = (1/z_t) * sum_c e_t*(yt_sh - ys_sh) + (log z_s - log z_t)
    num = jnp.sum(e_t * (yt_sh - ys_sh), axis=-1, keepdims=True)
    kl_row = num * pl.reciprocal(z_t, approx=False) + (jnp.log(z_s) - jnp.log(z_t))

    # In-kernel tail masking: rows whose global index >= batch contribute 0.
    row_start = (s * steps + i) * block_b
    row_ids = jax.lax.broadcasted_iota(jnp.int32, kl_row.shape, 0) + row_start
    kl_row = jnp.where(row_ids < batch, kl_row, 0.0)

    # sublane-only reduce into a tiny resident accumulator
    acc_ref[...] += jnp.sum(kl_row)

    @pl.when(i == pl.num_programs(1) - 1)
    def _():
        total = jnp.sum(acc_ref[...]) * scale
        out_ref[...] = jnp.zeros_like(out_ref) + total


def _physical_vmem_bytes():
    try:
        info = pltpu.get_tpu_info()
        v = getattr(info, "vmem_capacity_bytes", None)
        if v:
            return int(v)
    except Exception:
        pass
    return 128 << 20


def _vmem_budgets():
    """(plan_budget_bytes, vmem_limit_bytes) per generation."""
    phys = _physical_vmem_bytes()
    if phys <= (64 << 20):          # v7x-class: 64 MiB physical, fast HBM
        return 40 << 20, 48 << 20
    return 48 << 20, 64 << 20       # v5e / v6e: 128 MiB physical


def _default_num_splits():
    # 2 TensorCores per chip only on v7x; on v5e/v6e the extra split is pure
    # serial overhead (extra epilogue, coarser tiling).
    try:
        kind = jax.devices()[0].device_kind.lower()
    except Exception:
        return 1
    return 2 if ("v7" in kind or "7x" in kind) else 1


def _choose_block_b(B, C, itemsize, num_splits, plan_budget, *, max_block_b=4096):
    # VMEM plan per block row:
    #   2 inputs x 2 pipeline buffers x itemsize           (BlockSpec DMA bufs)
    # + ~4 live (block_b, C) f32 elementwise temporaries   (cast/shifted/exp/prod)
    bytes_per_row = C * (4 * itemsize + 16)
    rows_budget = max(plan_budget // bytes_per_row, 8)
    per_split = pl.cdiv(B, num_splits)
    want = ((per_split + 7) // 8) * 8
    block_b = min(max_block_b, (rows_budget // 8) * 8, want)
    return max(8, int(block_b))


def distill_kl(y_s, y_t, T, *, block_b=None, num_splits=None):
    """DistillKL loss. y_s, y_t: [B, C] logits (classes on the last/lane axis).

    Accepts the logits in their producer dtype (f32 or bf16); in-kernel math
    is f32.  Returns a scalar float32.
    """
    assert y_s.shape == y_t.shape and y_s.ndim == 2
    B, C = y_s.shape
    itemsize = jnp.dtype(y_s.dtype).itemsize

    if num_splits is None:
        num_splits = _default_num_splits()
    num_splits = max(1, min(int(num_splits), pl.cdiv(B, 8)))

    plan_budget, vmem_limit = _vmem_budgets()
    if block_b is None:
        block_b = _choose_block_b(B, C, itemsize, num_splits, plan_budget)
    assert block_b % 8 == 0

    steps = pl.cdiv(B, num_splits * block_b)      # batch tiles per split
    last_block = pl.cdiv(B, block_b) - 1          # clamp phantom tiles

    inv_t = float(1.0 / T)
    scale = float(T * T) / float(B * C)           # 'mean' divides by ALL elements

    kernel = functools.partial(
        _distill_kl_kernel, inv_t=inv_t, scale=scale,
        batch=B, block_b=block_b, steps=steps)

    def in_map(s, i):
        # Clamp so a tile that lies entirely past B still maps to a valid
        # block; its rows are masked to 0 inside the kernel.
        return (jnp.minimum(s * steps + i, last_block), 0)

    if num_splits > 1:
        # Only CORE_PARALLEL actually shards the grid across TensorCores.
        dim_sem = (pltpu.CORE_PARALLEL, pltpu.ARBITRARY)
    else:
        dim_sem = ("arbitrary", "arbitrary")

    out = pl.pallas_call(
        kernel,
        # one lane-dense (8,128) tile per split; every element of a tile
        # holds that split's already-scaled partial loss
        out_shape=jax.ShapeDtypeStruct((num_splits * 8, 128), jnp.float32),
        grid_spec=pltpu.PrefetchScalarGridSpec(
            num_scalar_prefetch=0,
            grid=(num_splits, steps),
            in_specs=[
                pl.BlockSpec((block_b, C), in_map),
                pl.BlockSpec((block_b, C), in_map),
            ],
            out_specs=pl.BlockSpec((8, 128), lambda s, i: (s, 0)),
            scratch_shapes=[pltpu.VMEM((1, 1), jnp.float32)],
        ),
        compiler_params=pltpu.CompilerParams(
            dimension_semantics=dim_sem,
            vmem_limit_bytes=vmem_limit,
        ),
    )(y_s, y_t)

    # one representative element per split tile -> sum of per-split partials
    return jnp.sum(out[0::8, 0])


def _reference(y_s, y_t, T):
    ys = y_s.astype(jnp.float32) / T
    yt = y_t.astype(jnp.float32) / T
    log_p_s = jax.nn.log_softmax(ys, axis=1)
    p_t = jax.nn.softmax(yt, axis=1)
    log_p_t = jax.nn.log_softmax(yt, axis=1)
    return jnp.sum(p_t * (log_p_t - log_p_s)) / (y_s.shape[0] * y_s.shape[1]) * (T ** 2)


if __name__ == "__main__":
    T = 4.0
    key = jax.random.PRNGKey(0)
    k1, k2, k3, k4 = jax.random.split(key, 4)

    # small primary shape; B < tile -> exercises in-kernel tail-row masking
    B, C = 4, 32
    y_s = jax.random.normal(k1, (B, C), dtype=jnp.float32)
    y_t = jax.random.normal(k2, (B, C), dtype=jnp.float32)
    loss = jax.block_until_ready(distill_kl(y_s, y_t, T))
    ref = _reference(y_s, y_t, T)
    assert jnp.allclose(loss, ref, rtol=1e-5, atol=1e-6), (loss, ref)

    # ragged case: batch not a tile multiple, classes not a lane multiple
    B2, C2 = 10, 1000
    y_s2 = jax.random.normal(k3, (B2, C2), dtype=jnp.float32)
    y_t2 = jax.random.normal(k4, (B2, C2), dtype=jnp.float32)
    loss2 = jax.block_until_ready(distill_kl(y_s2, y_t2, T))
    ref2 = _reference(y_s2, y_t2, T)
    assert jnp.allclose(loss2, ref2, rtol=1e-5, atol=1e-6), (loss2, ref2)

    # producer-native bf16 logits (no wrapper-side cast; halves HBM traffic);
    # reference uses the same bf16-rounded values so only summation order differs
    y_s3 = y_s.astype(jnp.bfloat16)
    y_t3 = y_t.astype(jnp.bfloat16)
    loss3 = jax.block_until_ready(distill_kl(y_s3, y_t3, T))
    ref3 = _reference(y_s3.astype(jnp.float32), y_t3.astype(jnp.float32), T)
    assert jnp.allclose(loss3, ref3, rtol=1e-5, atol=1e-6), (loss3, ref3)

    print("KERNEL_OK")
</pallas_src>

<mosaic_0001>
module attributes {stable_mosaic.version = 11 : i64} {
  func.func @_distill_kl_kernel(%arg0: i32, %arg1: i32, %arg2: memref<8x32xf32, #tpu.memory_space<vmem>>, %arg3: memref<8x32xf32, #tpu.memory_space<vmem>>, %arg4: memref<8x128xf32, #tpu.memory_space<vmem>>, %arg5: memref<1x1xf32, #tpu.memory_space<vmem>>) attributes {dimension_semantics = [#tpu.dimension_semantics<arbitrary>, #tpu.dimension_semantics<arbitrary>], iteration_bounds = array<i64: 1, 1>, scalar_prefetch = 0 : i64, scratch_operands = 1 : i64, tpu.core_type = #tpu.core_type<tc>, window_params = [{transform_indices = @transform_0, window_bounds = array<i64: 8, 32>}, {transform_indices = @transform_1, window_bounds = array<i64: 8, 32>}, {transform_indices = @transform_2, window_bounds = array<i64: 8, 128>}]} {
    %c0_i32 = arith.constant 0 : i32
    %0 = arith.cmpi eq, %arg1, %c0_i32 : i32
    %1 = arith.extui %0 : i1 to i32
    %c0_i32_0 = arith.constant 0 : i32
    %2 = arith.cmpi ne, %1, %c0_i32_0 : i32
    scf.if %2 {
      %cst_18 = arith.constant 0.000000e+00 : f32
      %54 = vector.broadcast %cst_18 : f32 to vector<1x1xf32>
      %c0_19 = arith.constant 0 : index
      %c0_20 = arith.constant 0 : index
      %55 = vector.load %arg5[%c0_19, %c0_20] : memref<1x1xf32, #tpu.memory_space<vmem>>, vector<1x1xf32>
      tpu.vector_store %arg5[%c0_19, %c0_20], %54 {strides = array<i32>} : memref<1x1xf32, #tpu.memory_space<vmem>>, vector<1x1xf32>,
    } else {
    }
    %c0 = arith.constant 0 : index
    %c0_1 = arith.constant 0 : index
    %3 = vector.load %arg2[%c0, %c0_1] : memref<8x32xf32, #tpu.memory_space<vmem>>, vector<8x32xf32>
    %cst = arith.constant 2.500000e-01 : f32
    %4 = vector.broadcast %cst : f32 to vector<8x32xf32>
    %5 = arith.mulf %3, %4 : vector<8x32xf32>
    %c0_2 = arith.constant 0 : index
    %c0_3 = arith.constant 0 : index
    %6 = vector.load %arg3[%c0_2, %c0_3] : memref<8x32xf32, #tpu.memory_space<vmem>>, vector<8x32xf32>
    %cst_4 = arith.constant 2.500000e-01 : f32
    %7 = vector.broadcast %cst_4 : f32 to vector<8x32xf32>
    %8 = arith.mulf %6, %7 : vector<8x32xf32>
    %cst_5 = arith.constant dense<0xFF800000> : vector<8xf32>
    %9 = vector.multi_reduction <maximumf>, %5, %cst_5 [1] : vector<8x32xf32> to vector<8xf32>
    %10 = vector.shape_cast %9 : vector<8xf32> to vector<8x1xf32>
    %11 = vector.broadcast %10 : vector<8x1xf32> to vector<8x32xf32>
    %12 = arith.subf %5, %11 : vector<8x32xf32>
    %cst_6 = arith.constant dense<0xFF800000> : vector<8xf32>
    %13 = vector.multi_reduction <maximumf>, %8, %cst_6 [1] : vector<8x32xf32> to vector<8xf32>
    %14 = vector.shape_cast %13 : vector<8xf32> to vector<8x1xf32>
    %15 = vector.broadcast %14 : vector<8x1xf32> to vector<8x32xf32>
    %16 = arith.subf %8, %15 : vector<8x32xf32>
    %17 = math.exp %12 : vector<8x32xf32>
    %cst_7 = arith.constant dense<0.000000e+00> : vector<8xf32>
    %18 = vector.multi_reduction <add>, %17, %cst_7 [1] : vector<8x32xf32> to vector<8xf32>
    %19 = vector.shape_cast %18 : vector<8xf32> to vector<8x1xf32>
    %20 = math.exp %16 : vector<8x32xf32>
    %cst_8 = arith.constant dense<0.000000e+00> : vector<8xf32>
    %21 = vector.multi_reduction <add>, %20, %cst_8 [1] : vector<8x32xf32> to vector<8xf32>
    %22 = vector.shape_cast %21 : vector<8xf32> to vector<8x1xf32>
    %23 = arith.subf %16, %12 : vector<8x32xf32>
    %24 = arith.mulf %20, %23 : vector<8x32xf32>
    %cst_9 = arith.constant dense<0.000000e+00> : vector<8xf32>
    %25 = vector.multi_reduction <add>, %24, %cst_9 [1] : vector<8x32xf32> to vector<8xf32>
    %26 = vector.shape_cast %25 : vector<8xf32> to vector<8x1xf32>
    %27 = tpu.reciprocal %22 : vector<8x1xf32> -> vector<8x1xf32>
    %28 = arith.mulf %26, %27 : vector<8x1xf32>
    %29 = math.log %19 : vector<8x1xf32>
    %30 = math.log %22 : vector<8x1xf32>
    %31 = arith.subf %29, %30 : vector<8x1xf32>
    %32 = arith.addf %28, %31 : vector<8x1xf32>
    %c1_i32 = arith.constant 1 : i32
    %33 = arith.muli %arg0, %c1_i32 : i32
    %34 = arith.addi %33, %arg1 : i32
    %c8_i32 = arith.constant 8 : i32
    %35 = arith.muli %34, %c8_i32 : i32
    %36 = tpu.iota {dimensions = array<i32: 0>} : vector<8x1xi32>
    %37 = vector.broadcast %35 : i32 to vector<8x1xi32>
    %38 = arith.addi %36, %37 : vector<8x1xi32>
    %c4_i32 = arith.constant 4 : i32
    %39 = vector.broadcast %c4_i32 : i32 to vector<8x1xi32>
    %40 = arith.cmpi slt, %38, %39 : vector<8x1xi32>
    %cst_10 = arith.constant 0.000000e+00 : f32
    %41 = vector.broadcast %cst_10 : f32 to vector<8x1xf32>
    %42 = arith.select %40, %32, %41 : vector<8x1xi1>, vector<8x1xf32>
    %c0_11 = arith.constant 0 : index
    %c0_12 = arith.constant 0 : index
    %43 = vector.load %arg5[%c0_11, %c0_12] : memref<1x1xf32, #tpu.memory_space<vmem>>, vector<1x1xf32>
    %44 = vector.shape_cast %42 : vector<8x1xf32> to vector<1x8x1xf32>
    %cst_13 = arith.constant dense<0.000000e+00> : vector<1xf32>
    %45 = vector.multi_reduction <add>, %44, %cst_13 [1, 2] : vector<1x8x1xf32> to vector<1xf32>
    %46 = vector.shape_cast %45 : vector<1xf32> to vector<1x1x1xf32>
    %47 = vector.extract %46[0, 0, 0] : f32 from vector<1x1x1xf32>
    %48 = vector.broadcast %47 : f32 to vector<1x1xf32>
    %49 = arith.addf %43, %48 : vector<1x1xf32>
    %c0_14 = arith.constant 0 : index
    %c0_15 = arith.constant 0 : index
    %50 = vector.load %arg5[%c0_14, %c0_15] : memref<1x1xf32, #tpu.memory_space<vmem>>, vector<1x1xf32>
    tpu.vector_store %arg5[%c0_14, %c0_15], %49 {strides = array<i32>} : memref<1x1xf32, #tpu.memory_space<vmem>>, vector<1x1xf32>,
    %c0_i32_16 = arith.constant 0 : i32
    %51 = arith.cmpi eq, %arg1, %c0_i32_16 : i32
    %52 = arith.extui %51 : i1 to i32
    %c0_i32_17 = arith.constant 0 : i32
    %53 = arith.cmpi ne, %52, %c0_i32_17 : i32
    scf.if %53 {
      %c0_18 = arith.constant 0 : index
      %c0_19 = arith.constant 0 : index
      %54 = vector.load %arg5[%c0_18, %c0_19] : memref<1x1xf32, #tpu.memory_space<vmem>>, vector<1x1xf32>
      %55 = vector.shape_cast %54 : vector<1x1xf32> to vector<1x1x1xf32>
      %cst_20 = arith.constant dense<0.000000e+00> : vector<1xf32>
      %56 = vector.multi_reduction <add>, %55, %cst_20 [1, 2] : vector<1x1x1xf32> to vector<1xf32>
      %57 = vector.shape_cast %56 : vector<1xf32> to vector<1x1x1xf32>
      %58 = vector.extract %57[0, 0, 0] : f32 from vector<1x1x1xf32>
      %cst_21 = arith.constant 1.250000e-01 : f32
      %59 = arith.mulf %58, %cst_21 : f32
      %cst_22 = arith.constant 0.000000e+00 : f32
      %60 = vector.broadcast %cst_22 : f32 to vector<8x128xf32>
      %61 = vector.broadcast %59 : f32 to vector<8x128xf32>
      %62 = arith.addf %60, %61 : vector<8x128xf32>
      %c0_23 = arith.constant 0 : index
      %c0_24 = arith.constant 0 : index
      %63 = vector.load %arg4[%c0_23, %c0_24] : memref<8x128xf32, #tpu.memory_space<vmem>>, vector<8x128xf32>
      tpu.vector_store %arg4[%c0_23, %c0_24], %62 {strides = array<i32>} : memref<8x128xf32, #tpu.memory_space<vmem>>, vector<8x128xf32>,
    } else {
    }
    return
  }
  func.func @transform_0(%arg0: i32, %arg1: i32) -> (i32, i32) {
    %c1_i32 = arith.constant 1 : i32
    %0 = arith.muli %arg0, %c1_i32 : i32
    %1 = arith.addi %0, %arg1 : i32
    %c0_i32 = arith.constant 0 : i32
    %2 = arith.minsi %1, %c0_i32 : i32
    %c0_i32_0 = arith.constant 0 : i32
    %c0_i32_1 = arith.constant 0 : i32
    return %2, %c0_i32_0 : i32, i32
  }
  func.func @transform_1(%arg0: i32, %arg1: i32) -> (i32, i32) {
    %c1_i32 = arith.constant 1 : i32
    %0 = arith.muli %arg0, %c1_i32 : i32
    %1 = arith.addi %0, %arg1 : i32
    %c0_i32 = arith.constant 0 : i32
    %2 = arith.minsi %1, %c0_i32 : i32
    %c0_i32_0 = arith.constant 0 : i32
    %c0_i32_1 = arith.constant 0 : i32
    return %2, %c0_i32_0 : i32, i32
  }
  func.func @transform_2(%arg0: i32, %arg1: i32) -> (i32, i32) {
    %c0_i32 = arith.constant 0 : i32
    %c0_i32_0 = arith.constant 0 : i32
    return %arg0, %c0_i32 : i32, i32
  }
}

</mosaic_0001>

<llo_original>
// kernel: tpu_custom_call.1
$region0: #{tpu_custom_call.1}
  #allocation0 [shape = 'u32[]', space=smem, size = 0x4, offset = 0x4, fixed_abs, tag = 'smem constant byte address 0x4 - core index']
  #allocation1 [shape = 'u32[144,128]{1,0:T(1,128)}', space=vmem, size = 0x12000, scoped, tag = 'internal scratch']
  #allocation2 [shape = 'f32[1,1]{1,0:T(1,128)}', space=vmem, size = 0x200, scoped, tag = 'scratch operand']
  %s0 = inlined_call_operand.hbm [shape: f32[4,32], index: 0, kind: input, shape index: {}]
  %s1 = inlined_call_operand.hbm [shape: f32[4,32], index: 1, kind: input, shape index: {}]
  %s2 = inlined_call_operand.hbm [shape: f32[8,128], index: 2, kind: output, shape index: {}]
  %s3 = sld [smem:[#allocation0]]
  $region34: #{tpu_custom_call.1} parent=0
    _
  %s5 = ssub.s32 1, %s3
  %s6 = scalar_select 0, %s5, %s3
  $region1: #{tpu_custom_call.1} parent=0
    #allocation3 [shape = 'u8[4096]{0}', space=vmem, size = 0x1000, scoped, tag = 'input window, operand 0, single buffered']
    #allocation4 [shape = 's32[1]{0}', space=sflag, size = 0x4, scoped, tag = 'scoped memory for tpu_custom_call.1']
    #allocation5 [shape = 's32[1]{0}', space=sflag, size = 0x4, scoped, tag = 'scoped memory for tpu_custom_call.1']
    #allocation6 [shape = 'u8[4096]{0}', space=vmem, size = 0x1000, scoped, tag = 'input window, operand 1, single buffered']
    #allocation7 [shape = 's32[1]{0}', space=sflag, size = 0x4, scoped, tag = 'scoped memory for tpu_custom_call.1']
    #allocation8 [shape = 'u8[4096]{0}', space=vmem, size = 0x1000, scoped, tag = 'output window, operand 0, single buffered']
    %7 = vsyncpa [#allocation4], 0
    %8 = vsyncpa [#allocation7], 0
    %9 = vsyncpa [#allocation5], 0
    // Predicated region
    $region2: #{tpu_custom_call.1} parent=1 // pred_check
      _
    $region3: #{tpu_custom_call.1} parent=1 // pred_check_branch
      %11 = sbr.rel (0) target = $region5
    $region4: #{tpu_custom_call.1} parent=1 // pred_region
      %s12 = sadd.s32 0, 0
      %p13 = scmp.lt.s32.totalorder %s12, 0
      %s14 = scalar_select %p13, %s12, 0
      %s15 = smul.u32 2, %s14
      %s16 = ssub.s32 1, %s15
      %s17 = smul.u32 64, %s16
      %s19 = ssub.s32 128, %s17
      %20 = vsyncadd [#allocation4], %s19
      %p21 = scmp.ne.s32.totalorder 0, %s17
      %s22 = smul.addr %s15, 64
      %s23 = scalar_lea.hbm %s0, %s22
      %s24 = smul.u32 4, %s16
      %s25 = sshll.u32 [#allocation3], 4
      %s26 = int_to_ptr.vmem [resolvable:$true] %s25
      %s27 = sshll.u32 %s24, 4
      %31 = dma.hbm_to_vmem [thread:$0]  (%p21), %s23, %s27, %s26, [#allocation4], 64, 64, 4
    $region5: #{tpu_custom_call.1} parent=1 // pred_fallthru
      _
    // Predicated region
    $region6: #{tpu_custom_call.1} parent=1 // pred_check
      _
    $region7: #{tpu_custom_call.1} parent=1 // pred_check_branch
      %33 = sbr.rel (0) target = $region9
    $region8: #{tpu_custom_call.1} parent=1 // pred_region
      %s34 = sadd.s32 0, 0
      %p35 = scmp.lt.s32.totalorder %s34, 0
      %s36 = scalar_select %p35, %s34, 0
      %s37 = smul.u32 2, %s36
      %s38 = ssub.s32 1, %s37
      %s39 = smul.u32 64, %s38
      %s41 = ssub.s32 128, %s39
      %42 = vsyncadd [#allocation7], %s41
      %p43 = scmp.ne.s32.totalorder 0, %s39
      %s44 = smul.addr %s37, 64
      %s45 = scalar_lea.hbm %s1, %s44
      %s46 = smul.u32 4, %s38
      %s47 = sshll.u32 [#allocation6], 4
      %s48 = int_to_ptr.vmem [resolvable:$true] %s47
      %s49 = sshll.u32 %s46, 4
      %53 = dma.hbm_to_vmem [thread:$0]  (%p43), %s45, %s49, %s48, [#allocation7], 64, 64, 4
    $region9: #{tpu_custom_call.1} parent=1 // pred_fallthru
      _
    // Predicated region
    $region10: #{tpu_custom_call.1} parent=1 // pred_check
      _
    $region11: #{tpu_custom_call.1} parent=1 // pred_check_branch
      %55 = sbr.rel (0) target = $region13
    $region12: #{tpu_custom_call.1} parent=1 // pred_region
      %56 = dma.done [#allocation4], 128
    $region13: #{tpu_custom_call.1} parent=1 // pred_fallthru
      _
    // Predicated region
    $region14: #{tpu_custom_call.1} parent=1 // pred_check
      _
    $region15: #{tpu_custom_call.1} parent=1 // pred_check_branch
      %58 = sbr.rel (0) target = $region17
    $region16: #{tpu_custom_call.1} parent=1 // pred_region
      %59 = dma.done [#allocation7], 128
    $region17: #{tpu_custom_call.1} parent=1 // pred_fallthru
      _
    %s60 = sadd.s32 0, 0
    %p61 = scmp.lt.s32.totalorder %s60, 0
    %s62 = scalar_select %p61, %s60, 0
    %s63 = smul.u32 2, %s62
    %s64 = ssub.s32 1, %s63
    %s65 = smul.u32 64, %s64
    %s66 = sadd.s32 0, 0
    %p67 = scmp.lt.s32.totalorder %s66, 0
    %s68 = scalar_select %p67, %s66, 0
    %s69 = smul.u32 2, %s68
    %s70 = ssub.s32 1, %s69
    %s71 = smul.u32 64, %s70
    %p72 = scmp.eq.s32.totalorder 0, 0
    // Predicated region
    $region18: #{tpu_custom_call.1} parent=1 // pred_check
      %p73 = pneg %p72
    $region19: #{tpu_custom_call.1} parent=1 // pred_check_branch
      %75 = sbr.rel (%p73) target = $region21
    $region20: #{tpu_custom_call.1} parent=1 // pred_region
      %vm76 = vcmask 0
      %77 = vst.msk [vmem:[#allocation2] sm:$0x1] %vm76, 0.0
    $region21: #{tpu_custom_call.1} parent=1 // pred_fallthru
      _
    %v78 = vld [vmem:[#allocation3] sm:$0xff]
    %v79 = vmul.f32 %v78, 0.25
    %v80 = vld [vmem:[#allocation6] sm:$0xff]
    %v81 = vmul.f32 %v80, 0.25
    %vm82 = vcmask 261120
    %v83 = vsel %vm82, %v79, -inf
    %84 = vmax.xlane.f32.xlu0 %v83
    %v85 = vpop.xlane.xlu0 %84
    %v86 = vsub.f32 %v79, %v85
    %v87 = vsel %vm82, %v81, -inf
    %88 = vmax.xlane.f32.xlu0 %v87
    %v89 = vpop.xlane.xlu0 %88
    %v90 = vsub.f32 %v81, %v89
    %v91 = vmul.f32 %v86, 1.442695
    %v92 = vpow.pop %v91
    %v93 = vsel %vm82, %v92, 0.0
    %94 = vadd.xlane.f32.xlu0 %v93
    %v95 = vpop.xlane.xlu0 %94
    %v96 = vmul.f32 %v90, 1.442695
    %v97 = vpow.pop %v96
    %v98 = vsel %vm82, %v97, 0.0
    %99 = vadd.xlane.f32.xlu0 %v98
    %v100 = vpop.xlane.xlu0 %99
    %v101 = vsub.f32 %v90, %v86
    %v102 = vmul.f32 %v97, %v101
    %v103 = vsel %vm82, %v102, 0.0
    %104 = vadd.xlane.f32.xlu0 %v103
    %v105 = vpop.xlane.xlu0 %104
    %v106 = vrcp.pop %v100
    %v107 = vmul.f32 %v105, %v106
    %v108 = vlog2.pop %v95
    %v109 = vmul.f32 %v108, 0.6931472
    %v110 = vlog2.pop %v100
    %v111 = vmul.f32 %v110, 0.6931472
    %v112 = vsub.f32 %v109, %v111
    %v113 = vadd.f32 %v107, %v112
    %s114 = sadd.s32 0, 0
    %s115 = smul.u32 %s114, 8
    %v116 = vlaneseq
    %v117 = vshrl.u32 %v116, 7
    %v118 = vstv %s115
    %v119 = vadd.s32 %v117, %v118
    %vm120 = vcmp.lt.s32.totalorder %v119, 4
    %v121 = vsel %vm120, %v113, 0.0
    %v122 = vld [vmem:[#allocation2] sm:$0x1]
    %vm123 = vcmask 7168
    %v124 = vsel %vm123, %v121, 0.0
    %125 = vadd.xlane.f32.xlu0 %v124
    %v126 = vpop.xlane.xlu0 %125
    %v127 = vrot.slane %v126, 4
    %v128 = vadd.f32 %v126, %v127
    %v129 = vrot.slane %v128, 2
    %v130 = vadd.f32 %v128, %v129
    %v131 = vrot.slane %v130, 1
    %v132 = vadd.f32 %v130, %v131
    %s133 = vtos %v132
    %v134 = vstv %s133
    %v135 = vadd.f32 %v122, %v134
    %vm136 = vcmask 0
    %137 = vst.msk [vmem:[#allocation2] sm:$0x1] %vm136, %v135
    // Predicated region
    $region22: #{tpu_custom_call.1} parent=1 // pred_check
      %p138 = pneg %p72
    $region23: #{tpu_custom_call.1} parent=1 // pred_check_branch
      %140 = sbr.rel (%p138) target = $region25
    $region24: #{tpu_custom_call.1} parent=1 // pred_region
      %v141 = vld [vmem:[#allocation2] sm:$0x1]
      %v142 = vadd.f32 %v141, 0.0
      %s143 = vtos %v142
      %s144 = smul.f32 %s143, 0.125
      %v145 = vstv %s144
      %v146 = vadd.f32 %v145, 0.0
      %147 = vst [vmem:[#allocation8] sm:$0xff] %v146
    $region25: #{tpu_custom_call.1} parent=1 // pred_fallthru
      _
    // Predicated region
    $region26: #{tpu_custom_call.1} parent=1 // pred_check
      _
    $region27: #{tpu_custom_call.1} parent=1 // pred_check_branch
      %149 = sbr.rel (0) target = $region29
    $region28: #{tpu_custom_call.1} parent=1 // pred_region
      %s151 = ssub.s32 128, 128
      %152 = vsyncadd [#allocation5], %s151
      %s154 = sshll.u32 [#allocation8], 4
      %s155 = int_to_ptr.vmem [resolvable:$true] %s154
      %157 = dma.vmem_to_hbm [thread:$0]  %s155, 128, %s2, [#allocation5]
    $region29: #{tpu_custom_call.1} parent=1 // pred_fallthru
      _
    // Predicated region
    $region30: #{tpu_custom_call.1} parent=1 // pred_check
      _
    $region31: #{tpu_custom_call.1} parent=1 // pred_check_branch
      %159 = sbr.rel (0) target = $region33
    $region32: #{tpu_custom_call.1} parent=1 // pred_region
      %160 = dma.done [#allocation5], 128
    $region33: #{tpu_custom_call.1} parent=1 // pred_fallthru
      _
    %161 = vsyncpa [#allocation4], 1
    %162 = vsyncpa [#allocation7], 1
    %163 = vsyncpa [#allocation5], 1

</llo_original>
